<compile_context>
chip_gen: v7x
topology: tpu7x:2x2x1
jax: 0.10.0
libtpu: 0.0.40
codegen_flags: <defaults>
</compile_context>

<pallas_src>
import functools

import jax
import jax.numpy as jnp
from jax.experimental import pallas as pl
from jax.experimental.pallas import tpu as pltpu

_LANE = 128
_SUB = 8
_ROW_CAP = 2048  # (2048, 128) f32 tile = 1 MiB; 4 buffers = 4 MiB (v7x-safe)


def _act_quant_kernel(x_ref, o_ref, *, a_bit: int):
    # Compute in f32 in-register regardless of storage dtype (v5e has no bf16 VPU).
    x = x_ref[...].astype(jnp.float32)
    xc = jnp.clip(x, 0.0, 1.0)
    if a_bit == 1:
        # torch.sign on clamped [0,1]: 0 -> 0, >0 -> 1
        q = jnp.sign(xc)
    else:
        n = float(2 ** a_bit - 1)
        # jnp.round == torch.round (round-half-to-even); keep exact '/ n'
        q = jnp.round(xc * n) / n
    o_ref[...] = q.astype(o_ref.dtype)


def activation_quantize(x: jax.Array, a_bit: int) -> jax.Array:
    """Pallas TPU implementation of activation_quantize_fn.forward."""
    assert a_bit <= 8 or a_bit == 32
    if a_bit == 32:
        # Identity path: no kernel launch, no HBM traffic.
        return x

    orig_shape = x.shape
    dtype = x.dtype
    total = x.size
    chunk = _LANE * _SUB

    flat = x.reshape(-1)
    padded = total
    if total % chunk != 0:
        # Rare ragged case only: pad up to an (8,128)-aligned length.
        padded = ((total + chunk - 1) // chunk) * chunk
        flat = jnp.pad(flat, (0, padded - total))
    rows = padded // _LANE
    x2d = flat.reshape(rows, _LANE)  # lane-dense view; free reshape when no pad

    # Large tile (up to 1 MiB f32); single full-extent block for small inputs.
    row_block = rows if rows <= _ROW_CAP else _ROW_CAP
    grid = (pl.cdiv(rows, row_block),)

    out2d = pl.pallas_call(
        functools.partial(_act_quant_kernel, a_bit=a_bit),
        out_shape=jax.ShapeDtypeStruct((rows, _LANE), dtype),
        grid_spec=pltpu.PrefetchScalarGridSpec(
            num_scalar_prefetch=0,
            grid=grid,
            in_specs=[pl.BlockSpec((row_block, _LANE), lambda i: (i, 0))],
            out_specs=pl.BlockSpec((row_block, _LANE), lambda i: (i, 0)),
        ),
        compiler_params=pltpu.CompilerParams(
            dimension_semantics=("parallel",)),
    )(x2d)

    out_flat = out2d.reshape(-1)
    if padded != total:
        out_flat = out_flat[:total]
    return out_flat.reshape(orig_shape)


def _reference(x, a_bit):
    if a_bit == 32:
        return x
    xc = jnp.clip(x, 0.0, 1.0)
    if a_bit == 1:
        return jnp.sign(xc)
    n = float(2 ** a_bit - 1)
    return jnp.round(xc * n) / n


if __name__ == "__main__":
    key = jax.random.PRNGKey(0)
    # NCHW input, small shapes
    x = jax.random.normal(key, (2, 4, 16, 16), dtype=jnp.float32)

    ok = True
    for a_bit in (4, 1, 32):
        y = jax.block_until_ready(activation_quantize(x, a_bit))
        y_ref = _reference(x, a_bit)
        if y.shape != x.shape or y.dtype != x.dtype:
            ok = False
        if not jnp.allclose(y, y_ref, atol=1e-6):
            ok = False

    if ok:
        print("KERNEL_OK")
    else:
        print("KERNEL_MISMATCH")
</pallas_src>

<mosaic_0001>
module attributes {stable_mosaic.version = 11 : i64} {
  func.func @_act_quant_kernel(%arg0: i32, %arg1: memref<16x128xf32, #tpu.memory_space<vmem>>, %arg2: memref<16x128xf32, #tpu.memory_space<vmem>>) attributes {dimension_semantics = [#tpu.dimension_semantics<parallel>], iteration_bounds = array<i64: 1>, scalar_prefetch = 0 : i64, scratch_operands = 0 : i64, tpu.core_type = #tpu.core_type<tc>, window_params = [{transform_indices = @transform_0, window_bounds = array<i64: 16, 128>}, {transform_indices = @transform_1, window_bounds = array<i64: 16, 128>}]} {
    %c0 = arith.constant 0 : index
    %c0_0 = arith.constant 0 : index
    %0 = vector.load %arg1[%c0, %c0_0] : memref<16x128xf32, #tpu.memory_space<vmem>>, vector<16x128xf32>
    %cst = arith.constant 0.000000e+00 : f32
    %cst_1 = arith.constant 1.000000e+00 : f32
    %1 = vector.broadcast %cst : f32 to vector<16x128xf32>
    %2 = arith.maximumf %1, %0 : vector<16x128xf32>
    %3 = vector.broadcast %cst_1 : f32 to vector<16x128xf32>
    %4 = arith.minimumf %3, %2 : vector<16x128xf32>
    %cst_2 = arith.constant 1.500000e+01 : f32
    %5 = vector.broadcast %cst_2 : f32 to vector<16x128xf32>
    %6 = arith.mulf %4, %5 : vector<16x128xf32>
    %7 = math.roundeven %6 : vector<16x128xf32>
    %cst_3 = arith.constant 1.500000e+01 : f32
    %8 = vector.broadcast %cst_3 : f32 to vector<16x128xf32>
    %9 = arith.divf %7, %8 : vector<16x128xf32>
    %c0_4 = arith.constant 0 : index
    %c0_5 = arith.constant 0 : index
    %10 = vector.load %arg2[%c0_4, %c0_5] : memref<16x128xf32, #tpu.memory_space<vmem>>, vector<16x128xf32>
    tpu.vector_store %arg2[%c0_4, %c0_5], %9 {strides = array<i32>} : memref<16x128xf32, #tpu.memory_space<vmem>>, vector<16x128xf32>,
    return
  }
  func.func @transform_0(%arg0: i32) -> (i32, i32) {
    %c0_i32 = arith.constant 0 : i32
    %c0_i32_0 = arith.constant 0 : i32
    return %arg0, %c0_i32 : i32, i32
  }
  func.func @transform_1(%arg0: i32) -> (i32, i32) {
    %c0_i32 = arith.constant 0 : i32
    %c0_i32_0 = arith.constant 0 : i32
    return %arg0, %c0_i32 : i32, i32
  }
}

</mosaic_0001>

<llo_original>
// kernel: tpu_custom_call.1
$region0: #{tpu_custom_call.1}
  #allocation0 [shape = 'u32[]', space=smem, size = 0x4, offset = 0x4, fixed_abs, tag = 'smem constant byte address 0x4 - core index']
  #allocation1 [shape = 'u32[144,128]{1,0:T(1,128)}', space=vmem, size = 0x12000, scoped, tag = 'internal scratch']
  %s0 = inlined_call_operand.hbm [shape: f32[16,128], index: 0, kind: input, shape index: {}]
  %s1 = inlined_call_operand.hbm [shape: f32[16,128], index: 1, kind: output, shape index: {}]
  %s2 = sld [smem:[#allocation0]]
  $region18: #{tpu_custom_call.1} parent=0
    _
  %s4 = ssub.s32 1, %s2
  %s5 = scalar_select 0, %s4, %s2
  $region1: #{tpu_custom_call.1} parent=0
    #allocation2 [shape = 'u8[8192]{0}', space=vmem, size = 0x2000, scoped, tag = 'input window, operand 0, single buffered']
    #allocation3 [shape = 's32[1]{0}', space=sflag, size = 0x4, scoped, tag = 'scoped memory for tpu_custom_call.1']
    #allocation4 [shape = 's32[1]{0}', space=sflag, size = 0x4, scoped, tag = 'scoped memory for tpu_custom_call.1']
    #allocation5 [shape = 'u8[8192]{0}', space=vmem, size = 0x2000, scoped, tag = 'output window, operand 0, single buffered']
    %6 = vsyncpa [#allocation3], 0
    %7 = vsyncpa [#allocation4], 0
    // Predicated region
    $region2: #{tpu_custom_call.1} parent=1 // pred_check
      _
    $region3: #{tpu_custom_call.1} parent=1 // pred_check_branch
      %9 = sbr.rel (0) target = $region5
    $region4: #{tpu_custom_call.1} parent=1 // pred_region
      %s11 = ssub.s32 256, 256
      %12 = vsyncadd [#allocation3], %s11
      %s13 = sshll.u32 [#allocation2], 4
      %s14 = int_to_ptr.vmem [resolvable:$true] %s13
      %19 = dma.hbm_to_vmem [thread:$0]  %s0, 256, %s14, [#allocation3], 128, 128, 8
    $region5: #{tpu_custom_call.1} parent=1 // pred_fallthru
      _
    // Predicated region
    $region6: #{tpu_custom_call.1} parent=1 // pred_check
      _
    $region7: #{tpu_custom_call.1} parent=1 // pred_check_branch
      %21 = sbr.rel (0) target = $region9
    $region8: #{tpu_custom_call.1} parent=1 // pred_region
      %22 = dma.done [#allocation3], 256
    $region9: #{tpu_custom_call.1} parent=1 // pred_fallthru
      _
    %v23 = vld [vmem:[#allocation2] sm:$0xff]
    %v24 = vld [vmem:[#allocation2 + $0x8] sm:$0xff]
    %v25 = vmax.f32 %v23, 0.0
    %v26 = vmax.f32 %v24, 0.0
    %v27 = vmin.f32 %v25, 1.0
    %v28 = vmin.f32 %v26, 1.0
    %v29 = vmul.f32 %v27, 15.0
    %v30 = vmul.f32 %v28, 15.0
    %v31 = vround.ne.pseudo %v29
    %v32 = vround.ne.pseudo %v30
    %v33 = vrcp.pop 15.0
    %v34 = vmul.f32 %v31, %v33
    %v35 = vmul.f32 %v32, %v33
    %36 = vst [vmem:[#allocation5] sm:$0xff] %v34
    %37 = vst [vmem:[#allocation5 + $0x8] sm:$0xff] %v35
    // Predicated region
    $region10: #{tpu_custom_call.1} parent=1 // pred_check
      _
    $region11: #{tpu_custom_call.1} parent=1 // pred_check_branch
      %39 = sbr.rel (0) target = $region13
    $region12: #{tpu_custom_call.1} parent=1 // pred_region
      %s41 = ssub.s32 256, 256
      %42 = vsyncadd [#allocation4], %s41
      %s43 = sshll.u32 [#allocation5], 4
      %s44 = int_to_ptr.vmem [resolvable:$true] %s43
      %49 = dma.vmem_to_hbm [thread:$0]  %s44, 256, %s1, [#allocation4], 128, 128, 8
    $region13: #{tpu_custom_call.1} parent=1 // pred_fallthru
      _
    // Predicated region
    $region14: #{tpu_custom_call.1} parent=1 // pred_check
      _
    $region15: #{tpu_custom_call.1} parent=1 // pred_check_branch
      %51 = sbr.rel (0) target = $region17
    $region16: #{tpu_custom_call.1} parent=1 // pred_region
      %52 = dma.done [#allocation4], 256
    $region17: #{tpu_custom_call.1} parent=1 // pred_fallthru
      _
    %53 = vsyncpa [#allocation3], 1
    %54 = vsyncpa [#allocation4], 1

</llo_original>
